<compile_context>
chip_gen: v7x
topology: tpu7x:2x2x1
jax: 0.10.0
libtpu: 0.0.40
codegen_flags: <defaults>
</compile_context>

<pallas_src>
import functools

import jax
import jax.numpy as jnp
from jax.experimental import pallas as pl
from jax.experimental.pallas import tpu as pltpu

# ---------------------------------------------------------------------------
# Model hyper-parameters (small, consistent with FCNet.__init__)
# ---------------------------------------------------------------------------
IN_FEATURES = 1600          # fixed by the module: x.view(-1, 1600)
LATENT_DIM = 32
N_HIDDEN_LAYERS = 2
OUTPUT_DIM = 10
BATCH = 2
ROW_TILE = 2048             # large-batch row tile (f32 tile: 13.1 MB)


def _round_up(x, m):
    return ((x + m - 1) // m) * m


def _cdiv(a, b):
    return (a + b - 1) // b


def _fcnet_kernel(x_ref, w0_ref, wh_ref, wf_ref, o_ref, *, n_hidden):
    """One row-tile of the FCNet forward.

    x_ref  : (TM, 1600) f32/bf16   input row tile (native dtype from HBM)
    w0_ref : (1600, LATENT) bf16   first linear, natural layout (resident)
    wh_ref : (n_hidden, LATENT, LATENT) f32  stacked hidden linears (resident)
    wf_ref : (LATENT, OUTPUT) f32            final linear (resident)
    o_ref  : (TM, OUTPUT) f32                log_softmax output
    """
    # In-kernel bf16 cast: cheap VPU work hidden under the HBM-bound pipeline;
    # no-op if the caller already supplies bf16 input.
    x = x_ref[...].astype(jnp.bfloat16)

    # First (and only non-trivial) matmul on the MXU: bf16 in, f32 accumulate.
    h = jnp.dot(x, w0_ref[...], preferred_element_type=jnp.float32)
    h = jnp.maximum(h, 0.0)            # f32 elementwise (VPU fast path on v5e)

    # Hidden 32x32 linears + ReLU. Tiny (few MXU passes); static unroll.
    for k in range(n_hidden):
        h = jnp.dot(h, wh_ref[k], preferred_element_type=jnp.float32)
        h = jnp.maximum(h, 0.0)

    # Final linear (no ReLU).
    logits = jnp.dot(h, wf_ref[...], preferred_element_type=jnp.float32)

    # log_softmax along the class axis, in f32.
    m = jnp.max(logits, axis=-1, keepdims=True)
    shifted = logits - m
    lse = jnp.log(jnp.sum(jnp.exp(shifted), axis=-1, keepdims=True))
    o_ref[...] = (shifted - lse).astype(o_ref.dtype)


def prepare_fcnet_params(w0, wh, wf):
    """One-time weight preparation (hoisted out of the per-call forward).

    w0 -> bf16 in its natural (1600, latent) layout for the MXU; hidden /
    final weights -> f32. Do this once and reuse across forward calls.
    """
    return (jnp.asarray(w0, jnp.bfloat16),
            jnp.asarray(wh, jnp.float32),
            jnp.asarray(wf, jnp.float32))


def fcnet_forward(x_nchw, w0_p, wh_p, wf_p, *, row_tile=ROW_TILE):
    """Run FCNet forward. x_nchw: (N, C, H, W) with C*H*W == 1600.

    w0_p, wh_p, wf_p come from prepare_fcnet_params.
    """
    x2d = x_nchw.reshape(-1, IN_FEATURES)
    n = x2d.shape[0]
    latent = w0_p.shape[1]
    n_hidden = int(wh_p.shape[0])

    # Row-tile selection:
    #  * tiny batches -> one tile rounded up to bf16's native 16-row pack
    #  * batches that would give a 1-step grid -> split into 2 tiles so the
    #    "parallel" axis can shard across v7x's two TensorCores
    #  * large batches -> row_tile rows per step (double-buffered by Pallas)
    tm = min(row_tile, _round_up(n, 16))
    if 16 < n <= tm:
        tm = _round_up(_cdiv(n, 2), 16)
    grid_m = _cdiv(n, tm)

    # Pad only truly tiny batches (< one tile, <= 15 extra rows). Large ragged
    # batches rely on Pallas's masked boundary block — no extra HBM copy of x.
    if n < tm:
        x2d = jnp.pad(x2d, ((0, tm - n), (0, 0)))

    n_out = grid_m * tm   # exact output blocks; the 10-wide tail slice is cheap

    # Generation-aware scoped-VMEM limit: enough for 2x (tm, 1600) input
    # buffers + resident weights + output buffers, capped below v7x's 64 MiB
    # physical VMEM and never below 32 MiB (v5e's scoped default is 16 MiB).
    x_bytes = jnp.dtype(x2d.dtype).itemsize
    w_bytes = (w0_p.size * jnp.dtype(w0_p.dtype).itemsize
               + wh_p.size * 4 + wf_p.size * 4)
    vmem_need = (2 * tm * IN_FEATURES * x_bytes
                 + 2 * tm * OUTPUT_DIM * 4
                 + 2 * w_bytes)
    vmem_limit = int(min(60 << 20, max(32 << 20, int(vmem_need * 1.4))))

    kernel = functools.partial(_fcnet_kernel, n_hidden=n_hidden)

    out = pl.pallas_call(
        kernel,
        out_shape=jax.ShapeDtypeStruct((n_out, OUTPUT_DIM), jnp.float32),
        grid_spec=pltpu.PrefetchScalarGridSpec(
            num_scalar_prefetch=0,
            grid=(grid_m,),
            in_specs=[
                # x: one row tile per grid step (pipelined).
                pl.BlockSpec((tm, IN_FEATURES), lambda i: (i, 0)),
                # Weights: resident in VMEM across the whole grid.
                pl.BlockSpec((IN_FEATURES, latent), lambda i: (0, 0)),
                pl.BlockSpec((n_hidden, latent, latent), lambda i: (0, 0, 0)),
                pl.BlockSpec((latent, OUTPUT_DIM), lambda i: (0, 0)),
            ],
            out_specs=pl.BlockSpec((tm, OUTPUT_DIM), lambda i: (i, 0)),
        ),
        compiler_params=pltpu.CompilerParams(
            # Row tiles are independent -> shard across v7x's 2 TensorCores.
            dimension_semantics=("parallel",),
            vmem_limit_bytes=vmem_limit,
        ),
    )(x2d, w0_p, wh_p, wf_p)

    return out[:n]


def fcnet_reference(x_nchw, w0, wh, wf, *, mimic_bf16=False):
    """Pure-JAX reference. mimic_bf16=True rounds the first-layer operands to
    bf16 exactly like the kernel does (tight comparison)."""
    x = x_nchw.reshape(-1, IN_FEATURES).astype(jnp.float32)
    w0_use = w0.astype(jnp.float32)
    if mimic_bf16:
        x = x.astype(jnp.bfloat16).astype(jnp.float32)
        w0_use = w0_use.astype(jnp.bfloat16).astype(jnp.float32)
    h = jnp.maximum(x @ w0_use, 0.0)
    for k in range(wh.shape[0]):
        h = jnp.maximum(h @ wh[k].astype(jnp.float32), 0.0)
    logits = h @ wf.astype(jnp.float32)
    return jax.nn.log_softmax(logits, axis=1)


if __name__ == "__main__":
    key = jax.random.PRNGKey(0)
    k_x, k_w0, k_wh, k_wf = jax.random.split(key, 4)

    # Input: NCHW with C*H*W = 1600 -> (2, 4, 20, 20)
    x = jax.random.normal(k_x, (BATCH, 4, 20, 20), dtype=jnp.float32)

    # Deterministic parameter init (Kaiming-like scaling, bias=False everywhere)
    w0 = jax.random.normal(k_w0, (IN_FEATURES, LATENT_DIM), dtype=jnp.float32)
    w0 = w0 * (1.0 / jnp.sqrt(IN_FEATURES))
    wh = jax.random.normal(
        k_wh, (N_HIDDEN_LAYERS, LATENT_DIM, LATENT_DIM), dtype=jnp.float32
    ) * (1.0 / jnp.sqrt(LATENT_DIM))
    wf = jax.random.normal(k_wf, (LATENT_DIM, OUTPUT_DIM), dtype=jnp.float32)
    wf = wf * (1.0 / jnp.sqrt(LATENT_DIM))

    # One-time weight prep (hoisted out of the per-call path), jitted forward.
    params = prepare_fcnet_params(w0, wh, wf)
    fwd = jax.jit(fcnet_forward)

    out = fwd(x, *params)
    out = jax.block_until_ready(out)
    assert out.shape == (BATCH, OUTPUT_DIM)

    # Tight check against a reference that mirrors the kernel's bf16 MXU inputs.
    ref_bf16 = fcnet_reference(x, w0, wh, wf, mimic_bf16=True)
    assert jnp.allclose(out, ref_bf16, atol=2e-3, rtol=2e-3), (
        jnp.max(jnp.abs(out - ref_bf16)))

    # Loose sanity check against the full-f32 reference (bf16 weight rounding).
    ref_f32 = fcnet_reference(x, w0, wh, wf, mimic_bf16=False)
    assert jnp.allclose(out, ref_f32, atol=1e-1, rtol=1e-1), (
        jnp.max(jnp.abs(out - ref_f32)))

    print("KERNEL_OK")
</pallas_src>

<mosaic_0001>
module attributes {stable_mosaic.version = 11 : i64} {
  func.func @_fcnet_kernel(%arg0: i32, %arg1: memref<16x1600xf32, #tpu.memory_space<vmem>>, %arg2: memref<1600x32xbf16, #tpu.memory_space<vmem>>, %arg3: memref<2x32x32xf32, #tpu.memory_space<vmem>>, %arg4: memref<32x10xf32, #tpu.memory_space<vmem>>, %arg5: memref<16x10xf32, #tpu.memory_space<vmem>>) attributes {dimension_semantics = [#tpu.dimension_semantics<parallel>], iteration_bounds = array<i64: 1>, scalar_prefetch = 0 : i64, scratch_operands = 0 : i64, tpu.core_type = #tpu.core_type<tc>, window_params = [{transform_indices = @transform_0, window_bounds = array<i64: 16, 1600>}, {pipeline_mode = #tpu.pipeline_mode<synchronous>, transform_indices = @transform_1, window_bounds = array<i64: 1600, 32>}, {pipeline_mode = #tpu.pipeline_mode<synchronous>, transform_indices = @transform_2, window_bounds = array<i64: 2, 32, 32>}, {pipeline_mode = #tpu.pipeline_mode<synchronous>, transform_indices = @transform_3, window_bounds = array<i64: 32, 10>}, {transform_indices = @transform_4, window_bounds = array<i64: 16, 10>}]} {
    %c0 = arith.constant 0 : index
    %c0_0 = arith.constant 0 : index
    %0 = vector.load %arg1[%c0, %c0_0] : memref<16x1600xf32, #tpu.memory_space<vmem>>, vector<16x1600xf32>
    %1 = arith.truncf %0 : vector<16x1600xf32> to vector<16x1600xbf16>
    %c0_1 = arith.constant 0 : index
    %c0_2 = arith.constant 0 : index
    %2 = vector.load %arg2[%c0_1, %c0_2] : memref<1600x32xbf16, #tpu.memory_space<vmem>>, vector<1600x32xbf16>
    %cst = arith.constant dense<0.000000e+00> : vector<16x32xf32>
    %3 = tpu.matmul %1, %2, %cst {dimension_numbers = #tpu.dot_dimension_numbers<[1], [0], [0], [1], [0, 0, 1, 1], [], []>} : vector<16x1600xbf16>, vector<1600x32xbf16>, vector<16x32xf32> -> vector<16x32xf32>
    %cst_3 = arith.constant 0.000000e+00 : f32
    %4 = vector.broadcast %cst_3 : f32 to vector<16x32xf32>
    %5 = arith.maximumf %3, %4 : vector<16x32xf32>
    %c0_4 = arith.constant 0 : index
    %c0_5 = arith.constant 0 : index
    %c0_6 = arith.constant 0 : index
    %6 = vector.load %arg3[%c0_4, %c0_5, %c0_6] : memref<2x32x32xf32, #tpu.memory_space<vmem>>, vector<1x32x32xf32>
    %7 = vector.shape_cast %6 : vector<1x32x32xf32> to vector<32x32xf32>
    %cst_7 = arith.constant dense<0.000000e+00> : vector<16x32xf32>
    %8 = tpu.matmul %5, %7, %cst_7 {dimension_numbers = #tpu.dot_dimension_numbers<[1], [0], [0], [1], [0, 0, 1, 1], [], []>} : vector<16x32xf32>, vector<32x32xf32>, vector<16x32xf32> -> vector<16x32xf32>
    %cst_8 = arith.constant 0.000000e+00 : f32
    %9 = vector.broadcast %cst_8 : f32 to vector<16x32xf32>
    %10 = arith.maximumf %8, %9 : vector<16x32xf32>
    %c1 = arith.constant 1 : index
    %c0_9 = arith.constant 0 : index
    %c0_10 = arith.constant 0 : index
    %11 = vector.load %arg3[%c1, %c0_9, %c0_10] : memref<2x32x32xf32, #tpu.memory_space<vmem>>, vector<1x32x32xf32>
    %12 = vector.shape_cast %11 : vector<1x32x32xf32> to vector<32x32xf32>
    %cst_11 = arith.constant dense<0.000000e+00> : vector<16x32xf32>
    %13 = tpu.matmul %10, %12, %cst_11 {dimension_numbers = #tpu.dot_dimension_numbers<[1], [0], [0], [1], [0, 0, 1, 1], [], []>} : vector<16x32xf32>, vector<32x32xf32>, vector<16x32xf32> -> vector<16x32xf32>
    %cst_12 = arith.constant 0.000000e+00 : f32
    %14 = vector.broadcast %cst_12 : f32 to vector<16x32xf32>
    %15 = arith.maximumf %13, %14 : vector<16x32xf32>
    %c0_13 = arith.constant 0 : index
    %c0_14 = arith.constant 0 : index
    %16 = vector.load %arg4[%c0_13, %c0_14] : memref<32x10xf32, #tpu.memory_space<vmem>>, vector<32x10xf32>
    %cst_15 = arith.constant dense<0.000000e+00> : vector<16x10xf32>
    %17 = tpu.matmul %15, %16, %cst_15 {dimension_numbers = #tpu.dot_dimension_numbers<[1], [0], [0], [1], [0, 0, 1, 1], [], []>} : vector<16x32xf32>, vector<32x10xf32>, vector<16x10xf32> -> vector<16x10xf32>
    %cst_16 = arith.constant dense<0xFF800000> : vector<16xf32>
    %18 = vector.multi_reduction <maximumf>, %17, %cst_16 [1] : vector<16x10xf32> to vector<16xf32>
    %19 = vector.shape_cast %18 : vector<16xf32> to vector<16x1xf32>
    %20 = vector.broadcast %19 : vector<16x1xf32> to vector<16x10xf32>
    %21 = arith.subf %17, %20 : vector<16x10xf32>
    %22 = math.exp %21 : vector<16x10xf32>
    %cst_17 = arith.constant dense<0.000000e+00> : vector<16xf32>
    %23 = vector.multi_reduction <add>, %22, %cst_17 [1] : vector<16x10xf32> to vector<16xf32>
    %24 = vector.shape_cast %23 : vector<16xf32> to vector<16x1xf32>
    %25 = math.log %24 : vector<16x1xf32>
    %26 = vector.broadcast %25 : vector<16x1xf32> to vector<16x10xf32>
    %27 = arith.subf %21, %26 : vector<16x10xf32>
    %c0_18 = arith.constant 0 : index
    %c0_19 = arith.constant 0 : index
    %28 = vector.load %arg5[%c0_18, %c0_19] : memref<16x10xf32, #tpu.memory_space<vmem>>, vector<16x10xf32>
    tpu.vector_store %arg5[%c0_18, %c0_19], %27 {strides = array<i32>} : memref<16x10xf32, #tpu.memory_space<vmem>>, vector<16x10xf32>,
    return
  }
  func.func @transform_0(%arg0: i32) -> (i32, i32) {
    %c0_i32 = arith.constant 0 : i32
    %c0_i32_0 = arith.constant 0 : i32
    return %arg0, %c0_i32 : i32, i32
  }
  func.func @transform_1(%arg0: i32) -> (i32, i32) {
    %c0_i32 = arith.constant 0 : i32
    %c0_i32_0 = arith.constant 0 : i32
    %c0_i32_1 = arith.constant 0 : i32
    return %c0_i32, %c0_i32_0 : i32, i32
  }
  func.func @transform_2(%arg0: i32) -> (i32, i32, i32) {
    %c0_i32 = arith.constant 0 : i32
    %c0_i32_0 = arith.constant 0 : i32
    %c0_i32_1 = arith.constant 0 : i32
    %c0_i32_2 = arith.constant 0 : i32
    return %c0_i32, %c0_i32_0, %c0_i32_1 : i32, i32, i32
  }
  func.func @transform_3(%arg0: i32) -> (i32, i32) {
    %c0_i32 = arith.constant 0 : i32
    %c0_i32_0 = arith.constant 0 : i32
    %c0_i32_1 = arith.constant 0 : i32
    return %c0_i32, %c0_i32_0 : i32, i32
  }
  func.func @transform_4(%arg0: i32) -> (i32, i32) {
    %c0_i32 = arith.constant 0 : i32
    %c0_i32_0 = arith.constant 0 : i32
    return %arg0, %c0_i32 : i32, i32
  }
}

</mosaic_0001>

<llo_original>
// kernel: fcnet_forward.1
$region0: #{fcnet_forward.1}
  #allocation0 [shape = 'u32[]', space=smem, size = 0x4, offset = 0x4, fixed_abs, tag = 'smem constant byte address 0x4 - core index']
  #allocation1 [shape = 'u32[144,128]{1,0:T(1,128)}', space=vmem, size = 0x12000, scoped, tag = 'internal scratch']
  %s0 = inlined_call_operand.vmem [shape: f32[16,1600], index: 0, kind: input, shape index: {}]
  %s1 = inlined_call_operand.vmem [shape: bf16[1600,32], index: 1, kind: input, shape index: {}]
  %s2 = inlined_call_operand.vmem [shape: f32[2,32,32], index: 2, kind: input, shape index: {}]
  %s3 = inlined_call_operand.vmem [shape: f32[32,10], index: 3, kind: input, shape index: {}]
  %s4 = inlined_call_operand.vmem [shape: f32[16,10], index: 4, kind: output, shape index: {}]
  %s5 = sld [smem:[#allocation0]]
  $region26: #{fcnet_forward.1} parent=0
    _
  %s7 = ssub.s32 1, %s5
  %s8 = scalar_select 0, %s7, %s5
  // Predicated region
  $region2: #{fcnet_forward.1} parent=0 // pred_check
    _
  $region3: #{fcnet_forward.1} parent=0 // pred_check_branch
    %10 = sbr.rel (0) target = $region5
  $region4: #{fcnet_forward.1} parent=0 // pred_region
    _
  $region5: #{fcnet_forward.1} parent=0 // pred_fallthru
    _
  // Predicated region
  $region6: #{fcnet_forward.1} parent=0 // pred_check
    _
  $region7: #{fcnet_forward.1} parent=0 // pred_check_branch
    %12 = sbr.rel (0) target = $region9
  $region8: #{fcnet_forward.1} parent=0 // pred_region
    _
  $region9: #{fcnet_forward.1} parent=0 // pred_fallthru
    _
  // Predicated region
  $region10: #{fcnet_forward.1} parent=0 // pred_check
    _
  $region11: #{fcnet_forward.1} parent=0 // pred_check_branch
    %14 = sbr.rel (0) target = $region13
  $region12: #{fcnet_forward.1} parent=0 // pred_region
    _
  $region13: #{fcnet_forward.1} parent=0 // pred_fallthru
    _
  // Predicated region
  $region14: #{fcnet_forward.1} parent=0 // pred_check
    _
  $region15: #{fcnet_forward.1} parent=0 // pred_check_branch
    %16 = sbr.rel (0) target = $region17
  $region16: #{fcnet_forward.1} parent=0 // pred_region
    _
  $region17: #{fcnet_forward.1} parent=0 // pred_fallthru
    _
  %v18 = vld [vmem:[%s0] sm:$0xff]
  %v19 = vld [vmem:[%s0 + $0x8] sm:$0xff]
  %v20 = vld [vmem:[%s0 + $0x10] sm:$0xff]
  %v21 = vld [vmem:[%s0 + $0x18] sm:$0xff]
  %v22 = vld [vmem:[%s0 + $0x20] sm:$0xff]
  %v23 = vld [vmem:[%s0 + $0x28] sm:$0xff]
  %v24 = vld [vmem:[%s0 + $0x30] sm:$0xff]
  %v25 = vld [vmem:[%s0 + $0x38] sm:$0xff]
  %v26 = vld [vmem:[%s0 + $0x40] sm:$0xff]
  %v27 = vld [vmem:[%s0 + $0x48] sm:$0xff]
  %v28 = vld [vmem:[%s0 + $0x50] sm:$0xff]
  %v29 = vld [vmem:[%s0 + $0x58] sm:$0xff]
  %v30 = vld [vmem:[%s0 + $0x60] sm:$0xff]
  %v31 = vld [vmem:[%s0 + $0x68] sm:$0xff]
  %v32 = vld [vmem:[%s0 + $0x70] sm:$0xff]
  %v33 = vld [vmem:[%s0 + $0x78] sm:$0xff]
  %v34 = vld [vmem:[%s0 + $0x80] sm:$0xff]
  %v35 = vld [vmem:[%s0 + $0x88] sm:$0xff]
  %v36 = vld [vmem:[%s0 + $0x90] sm:$0xff]
  %v37 = vld [vmem:[%s0 + $0x98] sm:$0xff]
  %v38 = vld [vmem:[%s0 + $0xa0] sm:$0xff]
  %v39 = vld [vmem:[%s0 + $0xa8] sm:$0xff]
  %v40 = vld [vmem:[%s0 + $0xb0] sm:$0xff]
  %v41 = vld [vmem:[%s0 + $0xb8] sm:$0xff]
  %v42 = vld [vmem:[%s0 + $0xc0] sm:$0xff]
  %v43 = vld [vmem:[%s0 + $0xc8] sm:$0xff]
  %v44 = vpack.c.bf16 %v31, %v18
  %v45 = vpack.c.bf16 %v32, %v19
  %v46 = vpack.c.bf16 %v33, %v20
  %v47 = vpack.c.bf16 %v34, %v21
  %v48 = vpack.c.bf16 %v35, %v22
  %v49 = vpack.c.bf16 %v36, %v23
  %v50 = vpack.c.bf16 %v37, %v24
  %v51 = vpack.c.bf16 %v38, %v25
  %v52 = vpack.c.bf16 %v39, %v26
  %v53 = vpack.c.bf16 %v40, %v27
  %v54 = vpack.c.bf16 %v41, %v28
  %v55 = vpack.c.bf16 %v42, %v29
  %v56 = vpack.c.bf16 %v43, %v30
  %v57 = vld [vmem:[%s1] sm:$0xf]
  %v58 = vld [vmem:[%s1 + $0x4] sm:$0xf]
  %v59 = vld [vmem:[%s1 + $0x8] sm:$0xf]
  %v60 = vld [vmem:[%s1 + $0xc] sm:$0xf]
  %v61 = vld [vmem:[%s1 + $0x10] sm:$0xf]
  %v62 = vld [vmem:[%s1 + $0x14] sm:$0xf]
  %v63 = vld [vmem:[%s1 + $0x18] sm:$0xf]
  %v64 = vld [vmem:[%s1 + $0x1c] sm:$0xf]
  %v65 = vld [vmem:[%s1 + $0x20] sm:$0xf]
  %v66 = vld [vmem:[%s1 + $0x24] sm:$0xf]
  %v67 = vld [vmem:[%s1 + $0x28] sm:$0xf]
  %v68 = vld [vmem:[%s1 + $0x2c] sm:$0xf]
  %v69 = vld [vmem:[%s1 + $0x30] sm:$0xf]
  %v70 = vld [vmem:[%s1 + $0x34] sm:$0xf]
  %v71 = vld [vmem:[%s1 + $0x38] sm:$0xf]
  %v72 = vld [vmem:[%s1 + $0x3c] sm:$0xf]
  %v73 = vld [vmem:[%s1 + $0x40] sm:$0xf]
  %v74 = vld [vmem:[%s1 + $0x44] sm:$0xf]
  %v75 = vld [vmem:[%s1 + $0x48] sm:$0xf]
  %v76 = vld [vmem:[%s1 + $0x4c] sm:$0xf]
  %v77 = vld [vmem:[%s1 + $0x50] sm:$0xf]
  %v78 = vld [vmem:[%s1 + $0x54] sm:$0xf]
  %v79 = vld [vmem:[%s1 + $0x58] sm:$0xf]
  %v80 = vld [vmem:[%s1 + $0x5c] sm:$0xf]
  %v81 = vld [vmem:[%s1 + $0x60] sm:$0xf]
  %v82 = vld [vmem:[%s1 + $0x64] sm:$0xf]
  %v83 = vld [vmem:[%s1 + $0x68] sm:$0xf]
  %v84 = vld [vmem:[%s1 + $0x6c] sm:$0xf]
  %v85 = vld [vmem:[%s1 + $0x70] sm:$0xf]
  %v86 = vld [vmem:[%s1 + $0x74] sm:$0xf]
  %v87 = vld [vmem:[%s1 + $0x78] sm:$0xf]
  %v88 = vld [vmem:[%s1 + $0x7c] sm:$0xf]
  %v89 = vld [vmem:[%s1 + $0x80] sm:$0xf]
  %v90 = vld [vmem:[%s1 + $0x84] sm:$0xf]
  %v91 = vld [vmem:[%s1 + $0x88] sm:$0xf]
  %v92 = vld [vmem:[%s1 + $0x8c] sm:$0xf]
  %v93 = vld [vmem:[%s1 + $0x90] sm:$0xf]
  %v94 = vld [vmem:[%s1 + $0x94] sm:$0xf]
  %v95 = vld [vmem:[%s1 + $0x98] sm:$0xf]
  %v96 = vld [vmem:[%s1 + $0x9c] sm:$0xf]
  %v97 = vld [vmem:[%s1 + $0xa0] sm:$0xf]
  %v98 = vld [vmem:[%s1 + $0xa4] sm:$0xf]
  %v99 = vld [vmem:[%s1 + $0xa8] sm:$0xf]
  %v100 = vld [vmem:[%s1 + $0xac] sm:$0xf]
  %v101 = vld [vmem:[%s1 + $0xb0] sm:$0xf]
  %v102 = vld [vmem:[%s1 + $0xb4] sm:$0xf]
  %v103 = vld [vmem:[%s1 + $0xb8] sm:$0xf]
  %v104 = vld [vmem:[%s1 + $0xbc] sm:$0xf]
  %v105 = vld [vmem:[%s1 + $0xc0] sm:$0xf]
  %v106 = vld [vmem:[%s1 + $0xc4] sm:$0xf]
  %v107 = vld [vmem:[%s1 + $0xc8] sm:$0xf]
  %v108 = vld [vmem:[%s1 + $0xcc] sm:$0xf]
  %v109 = vld [vmem:[%s1 + $0xd0] sm:$0xf]
  %v110 = vld [vmem:[%s1 + $0xd4] sm:$0xf]
  %v111 = vld [vmem:[%s1 + $0xd8] sm:$0xf]
  %v112 = vld [vmem:[%s1 + $0xdc] sm:$0xf]
  %v113 = vld [vmem:[%s1 + $0xe0] sm:$0xf]
  %v114 = vld [vmem:[%s1 + $0xe4] sm:$0xf]
  %v115 = vld [vmem:[%s1 + $0xe8] sm:$0xf]
  %v116 = vld [vmem:[%s1 + $0xec] sm:$0xf]
  %v117 = vld [vmem:[%s1 + $0xf0] sm:$0xf]
  %v118 = vld [vmem:[%s1 + $0xf4] sm:$0xf]
  %v119 = vld [vmem:[%s1 + $0xf8] sm:$0xf]
  %v120 = vld [vmem:[%s1 + $0xfc] sm:$0xf]
  %v121 = vld [vmem:[%s1 + $0x100] sm:$0xf]
  %v122 = vld [vmem:[%s1 + $0x104] sm:$0xf]
  %v123 = vld [vmem:[%s1 + $0x108] sm:$0xf]
  %v124 = vld [vmem:[%s1 + $0x10c] sm:$0xf]
  %v125 = vld [vmem:[%s1 + $0x110] sm:$0xf]
  %v126 = vld [vmem:[%s1 + $0x114] sm:$0xf]
  %v127 = vld [vmem:[%s1 + $0x118] sm:$0xf]
  %v128 = vld [vmem:[%s1 + $0x11c] sm:$0xf]
  %v129 = vld [vmem:[%s1 + $0x120] sm:$0xf]
  %v130 = vld [vmem:[%s1 + $0x124] sm:$0xf]
  %v131 = vld [vmem:[%s1 + $0x128] sm:$0xf]
  %v132 = vld [vmem:[%s1 + $0x12c] sm:$0xf]
  %v133 = vld [vmem:[%s1 + $0x130] sm:$0xf]
  %v134 = vld [vmem:[%s1 + $0x134] sm:$0xf]
  %v135 = vld [vmem:[%s1 + $0x138] sm:$0xf]
  %v136 = vld [vmem:[%s1 + $0x13c] sm:$0xf]
  %v137 = vld [vmem:[%s1 + $0x140] sm:$0xf]
  %v138 = vld [vmem:[%s1 + $0x144] sm:$0xf]
  %v139 = vld [vmem:[%s1 + $0x148] sm:$0xf]
  %v140 = vld [vmem:[%s1 + $0x14c] sm:$0xf]
  %v141 = vld [vmem:[%s1 + $0x150] sm:$0xf]
  %v142 = vld [vmem:[%s1 + $0x154] sm:$0xf]
  %v143 = vld [vmem:[%s1 + $0x158] sm:$0xf]
  %v144 = vld [vmem:[%s1 + $0x15c] sm:$0xf]
  %v145 = vld [vmem:[%s1 + $0x160] sm:$0xf]
  %v146 = vld [vmem:[%s1 + $0x164] sm:$0xf]
  %v147 = vld [vmem:[%s1 + $0x168] sm:$0xf]
  %v148 = vld [vmem:[%s1 + $0x16c] sm:$0xf]
  %v149 = vld [vmem:[%s1 + $0x170] sm:$0xf]
  %v150 = vld [vmem:[%s1 + $0x174] sm:$0xf]
  %v151 = vld [vmem:[%s1 + $0x178] sm:$0xf]
  %v152 = vld [vmem:[%s1 + $0x17c] sm:$0xf]
  %v153 = vld [vmem:[%s1 + $0x180] sm:$0xf]
  %v154 = vld [vmem:[%s1 + $0x184] sm:$0xf]
  %v155 = vld [vmem:[%s1 + $0x188] sm:$0xf]
  %v156 = vld [vmem:[%s1 + $0x18c] sm:$0xf]
  %v157 = vld [vmem:[%s1 + $0x190] sm:$0xf]
  %v158 = vld [vmem:[%s1 + $0x194] sm:$0xf]
  %v159 = vld [vmem:[%s1 + $0x198] sm:$0xf]
  %v160 = vld [vmem:[%s1 + $0x19c] sm:$0xf]
  %v161 = vld [vmem:[%s1 + $0x1a0] sm:$0xf]
  %v162 = vld [vmem:[%s1 + $0x1a4] sm:$0xf]
  %v163 = vld [vmem:[%s1 + $0x1a8] sm:$0xf]
  %v164 = vld [vmem:[%s1 + $0x1ac] sm:$0xf]
  %v165 = vld [vmem:[%s1 + $0x1b0] sm:$0xf]
  %v166 = vld [vmem:[%s1 + $0x1b4] sm:$0xf]
  %v167 = vld [vmem:[%s1 + $0x1b8] sm:$0xf]
  %v168 = vld [vmem:[%s1 + $0x1bc] sm:$0xf]
  %v169 = vld [vmem:[%s1 + $0x1c0] sm:$0xf]
  %v170 = vld [vmem:[%s1 + $0x1c4] sm:$0xf]
  %v171 = vld [vmem:[%s1 + $0x1c8] sm:$0xf]
  %v172 = vld [vmem:[%s1 + $0x1cc] sm:$0xf]
  %v173 = vld [vmem:[%s1 + $0x1d0] sm:$0xf]
  %v174 = vld [vmem:[%s1 + $0x1d4] sm:$0xf]
  %v175 = vld [vmem:[%s1 + $0x1d8] sm:$0xf]
  %v176 = vld [vmem:[%s1 + $0x1dc] sm:$0xf]
  %v177 = vld [vmem:[%s1 + $0x1e0] sm:$0xf]
  %v178 = vld [vmem:[%s1 + $0x1e4] sm:$0xf]
  %v179 = vld [vmem:[%s1 + $0x1e8] sm:$0xf]
  %v180 = vld [vmem:[%s1 + $0x1ec] sm:$0xf]
  %v181 = vld [vmem:[%s1 + $0x1f0] sm:$0xf]
  %v182 = vld [vmem:[%s1 + $0x1f4] sm:$0xf]
  %v183 = vld [vmem:[%s1 + $0x1f8] sm:$0xf]
  %v184 = vld [vmem:[%s1 + $0x1fc] sm:$0xf]
  %v185 = vld [vmem:[%s1 + $0x200] sm:$0xf]
  %v186 = vld [vmem:[%s1 + $0x204] sm:$0xf]
  %v187 = vld [vmem:[%s1 + $0x208] sm:$0xf]
  %v188 = vld [vmem:[%s1 + $0x20c] sm:$0xf]
  %v189 = vld [vmem:[%s1 + $0x210] sm:$0xf]
  %v190 = vld [vmem:[%s1 + $0x214] sm:$0xf]
  %v191 = vld [vmem:[%s1 + $0x218] sm:$0xf]
  %v192 = vld [vmem:[%s1 + $0x21c] sm:$0xf]
  %v193 = vld [vmem:[%s1 + $0x220] sm:$0xf]
  %v194 = vld [vmem:[%s1 + $0x224] sm:$0xf]
  %v195 = vld [vmem:[%s1 + $0x228] sm:$0xf]
  %v196 = vld [vmem:[%s1 + $0x22c] sm:$0xf]
  %v197 = vld [vmem:[%s1 + $0x230] sm:$0xf]
  %v198 = vld [vmem:[%s1 + $0x234] sm:$0xf]
  %v199 = vld [vmem:[%s1 + $0x238] sm:$0xf]
  %v200 = vld [vmem:[%s1 + $0x23c] sm:$0xf]
  %v201 = vld [vmem:[%s1 + $0x240] sm:$0xf]
  %v202 = vld [vmem:[%s1 + $0x244] sm:$0xf]
  %v203 = vld [vmem:[%s1 + $0x248] sm:$0xf]
  %v204 = vld [vmem:[%s1 + $0x24c] sm:$0xf]
  %v205 = vld [vmem:[%s1 + $0x250] sm:$0xf]
  %v206 = vld [vmem:[%s1 + $0x254] sm:$0xf]
  %v207 = vld [vmem:[%s1 + $0x258] sm:$0xf]
  %v208 = vld [vmem:[%s1 + $0x25c] sm:$0xf]
  %v209 = vld [vmem:[%s1 + $0x260] sm:$0xf]
  %v210 = vld [vmem:[%s1 + $0x264] sm:$0xf]
  %v211 = vld [vmem:[%s1 + $0x268] sm:$0xf]
  %v212 = vld [vmem:[%s1 + $0x26c] sm:$0xf]
  %v213 = vld [vmem:[%s1 + $0x270] sm:$0xf]
  %v214 = vld [vmem:[%s1 + $0x274] sm:$0xf]
  %v215 = vld [vmem:[%s1 + $0x278] sm:$0xf]
  %v216 = vld [vmem:[%s1 + $0x27c] sm:$0xf]
  %v217 = vld [vmem:[%s1 + $0x280] sm:$0xf]
  %v218 = vld [vmem:[%s1 + $0x284] sm:$0xf]
  %v219 = vld [vmem:[%s1 + $0x288] sm:$0xf]
  %v220 = vld [vmem:[%s1 + $0x28c] sm:$0xf]
  %v221 = vld [vmem:[%s1 + $0x290] sm:$0xf]
  %v222 = vld [vmem:[%s1 + $0x294] sm:$0xf]
  %v223 = vld [vmem:[%s1 + $0x298] sm:$0xf]
  %v224 = vld [vmem:[%s1 + $0x29c] sm:$0xf]
  %v225 = vld [vmem:[%s1 + $0x2a0] sm:$0xf]
  %v226 = vld [vmem:[%s1 + $0x2a4] sm:$0xf]
  %v227 = vld [vmem:[%s1 + $0x2a8] sm:$0xf]
  %v228 = vld [vmem:[%s1 + $0x2ac] sm:$0xf]
  %v229 = vld [vmem:[%s1 + $0x2b0] sm:$0xf]
  %v230 = vld [vmem:[%s1 + $0x2b4] sm:$0xf]
  %v231 = vld [vmem:[%s1 + $0x2b8] sm:$0xf]
  %v232 = vld [vmem:[%s1 + $0x2bc] sm:$0xf]
  %v233 = vld [vmem:[%s1 + $0x2c0] sm:$0xf]
  %v234 = vld [vmem:[%s1 + $0x2c4] sm:$0xf]
  %v235 = vld [vmem:[%s1 + $0x2c8] sm:$0xf]
  %v236 = vld [vmem:[%s1 + $0x2cc] sm:$0xf]
  %v237 = vld [vmem:[%s1 + $0x2d0] sm:$0xf]
  %v238 = vld [vmem:[%s1 + $0x2d4] sm:$0xf]
  %v239 = vld [vmem:[%s1 + $0x2d8] sm:$0xf]
  %v240 = vld [vmem:[%s1 + $0x2dc] sm:$0xf]
  %v241 = vld [vmem:[%s1 + $0x2e0] sm:$0xf]
  %v242 = vld [vmem:[%s1 + $0x2e4] sm:$0xf]
  %v243 = vld [vmem:[%s1 + $0x2e8] sm:$0xf]
  %v244 = vld [vmem:[%s1 + $0x2ec] sm:$0xf]
  %v245 = vld [vmem:[%s1 + $0x2f0] sm:$0xf]
  %v246 = vld [vmem:[%s1 + $0x2f4] sm:$0xf]
  %v247 = vld [vmem:[%s1 + $0x2f8] sm:$0xf]
  %v248 = vld [vmem:[%s1 + $0x2fc] sm:$0xf]
  %v249 = vld [vmem:[%s1 + $0x300] sm:$0xf]
  %v250 = vld [vmem:[%s1 + $0x304] sm:$0xf]
  %v251 = vld [vmem:[%s1 + $0x308] sm:$0xf]
  %v252 = vld [vmem:[%s1 + $0x30c] sm:$0xf]
  %v253 = vld [vmem:[%s1 + $0x310] sm:$0xf]
  %v254 = vld [vmem:[%s1 + $0x314] sm:$0xf]
  %v255 = vld [vmem:[%s1 + $0x318] sm:$0xf]
  %v256 = vld [vmem:[%s1 + $0x31c] sm:$0xf]
  %v457 = vunpack.c.l.b16 %v57
  %v458 = vunpack.c.l.b16 %v58
  %v459 = vunpack.c.l.b16 %v59
  %v460 = vunpack.c.l.b16 %v60
  %v461 = vunpack.c.l.b16 %v61
  %v462 = vunpack.c.l.b16 %v62
  %v463 = vunpack.c.l.b16 %v63
  %v464 = vunpack.c.l.b16 %v64
  %v465 = vunpack.c.l.b16 %v65
  %v466 = vunpack.c.l.b16 %v66
  %v467 = vunpack.c.l.b16 %v67
  %v468 = vunpack.c.l.b16 %v68
  %v469 = vunpack.c.l.b16 %v69
  %v470 = vunpack.c.l.b16 %v70
  %v471 = vunpack.c.l.b16 %v71
  %v472 = vunpack.c.l.b16 %v72
  %v473 = vunpack.c.l.b16 %v73
  %v474 = vunpack.c.l.b16 %v74
  %v475 = vunpack.c.l.b16 %v75
  %v476 = vunpack.c.l.b16 %v76
  %v477 = vunpack.c.l.b16 %v77
  %v478 = vunpack.c.l.b16 %v78
  %v479 = vunpack.c.l.b16 %v79
  %v480 = vunpack.c.l.b16 %v80
  %v481 = vunpack.c.l.b16 %v81
  %v482 = vunpack.c.l.b16 %v82
  %v483 = vunpack.c.l.b16 %v83
  %v484 = vunpack.c.l.b16 %v84
  %v485 = vunpack.c.l.b16 %v85
  %v486 = vunpack.c.l.b16 %v86
  %v487 = vunpack.c.l.b16 %v87
  %v488 = vunpack.c.l.b16 %v88
  %v489 = vunpack.c.l.b16 %v89
  %v490 = vunpack.c.l.b16 %v90
  %v491 = vunpack.c.l.b16 %v91
  %v492 = vunpack.c.l.b16 %v92
  %v493 = vunpack.c.l.b16 %v93
  %v494 = vunpack.c.l.b16 %v94
  %v495 = vunpack.c.l.b16 %v95
  %v496 = vunpack.c.l.b16 %v96
  %v497 = vunpack.c.l.b16 %v97
  %v498 = vunpack.c.l.b16 %v98
  %v499 = vunpack.c.l.b16 %v99
  %v500 = vunpack.c.l.b16 %v100
  %v501 = vunpack.c.l.b16 %v101
  %v502 = vunpack.c.l.b16 %v102
  %v503 = vunpack.c.l.b16 %v103
  %v504 = vunpack.c.l.b16 %v104
  %v505 = vunpack.c.l.b16 %v105
  %v506 = vunpack.c.l.b16 %v106
  %v507 = vunpack.c.l.b16 %v107
  %v508 = vunpack.c.l.b16 %v108
  %v509 = vunpack.c.l.b16 %v109
  %v510 = vunpack.c.l.b16 %v110
  %v511 = vunpack.c.l.b16 %v111
  %v512 = vunpack.c.l.b16 %v112
  %v513 = vunpack.c.l.b16 %v113
  %v514 = vunpack.c.l.b16 %v114
  %v515 = vunpack.c.l.b16 %v115
  %v516 = vunpack.c.l.b16 %v116
  %v517 = vunpack.c.l.b16 %v117
  %v518 = vunpack.c.l.b16 %v118
  %v519 = vunpack.c.l.b16 %v119
  %v520 = vunpack.c.l.b16 %v120
  %v521 = vunpack.c.l.b16 %v121
  %v522 = vunpack.c.l.b16 %v122
  %v523 = vunpack.c.l.b16 %v123
  %v524 = vunpack.c.l.b16 %v124
  %v525 = vunpack.c.l.b16 %v125
  %v526 = vunpack.c.l.b16 %v126
  %v527 = vunpack.c.l.b16 %v127
  %v528 = vunpack.c.l.b16 %v128
  %v529 = vunpack.c.l.b16 %v129
  %v530 = vunpack.c.l.b16 %v130
  %v531 = vunpack.c.l.b16 %v131
  %v532 = vunpack.c.l.b16 %v132
  %v533 = vunpack.c.l.b16 %v133
  %v534 = vunpack.c.l.b16 %v134
  %v535 = vunpack.c.l.b16 %v135
  %v536 = vunpack.c.l.b16 %v136
  %v537 = vunpack.c.l.b16 %v137
  %v538 = vunpack.c.l.b16 %v138
  %v539 = vunpack.c.l.b16 %v139
  %v540 = vunpack.c.l.b16 %v140
  %v541 = vunpack.c.l.b16 %v141
  %v542 = vunpack.c.l.b16 %v142
  %v543 = vunpack.c.l.b16 %v143
  %v544 = vunpack.c.l.b16 %v144
  %v545 = vunpack.c.l.b16 %v145
  %v546 = vunpack.c.l.b16 %v146
  %v547 = vunpack.c.l.b16 %v147
  %v548 = vunpack.c.l.b16 %v148
  %v549 = vunpack.c.l.b16 %v149
  %v550 = vunpack.c.l.b16 %v150
  %v551 = vunpack.c.l.b16 %v151
  %v552 = vunpack.c.l.b16 %v152
  %v553 = vunpack.c.l.b16 %v153
  %v554 = vunpack.c.l.b16 %v154
  %v555 = vunpack.c.l.b16 %v155
  %v556 = vunpack.c.l.b16 %v156
  %v557 = vunpack.c.l.b16 %v157
  %v558 = vunpack.c.l.b16 %v158
  %v559 = vunpack.c.l.b16 %v159
  %v560 = vunpack.c.l.b16 %v160
  %v561 = vunpack.c.l.b16 %v161
  %v562 = vunpack.c.l.b16 %v162
  %v563 = vunpack.c.l.b16 %v163
  %v564 = vunpack.c.l.b16 %v164
  %v565 = vunpack.c.l.b16 %v165
  %v566 = vunpack.c.l.b16 %v166
  %v567 = vunpack.c.l.b16 %v167
  %v568 = vunpack.c.l.b16 %v168
  %v569 = vunpack.c.l.b16 %v169
  %v570 = vunpack.c.l.b16 %v170
  %v571 = vunpack.c.l.b16 %v171
  %v572 = vunpack.c.l.b16 %v172
  %v573 = vunpack.c.l.b16 %v173
  %v574 = vunpack.c.l.b16 %v174
  %v575 = vunpack.c.l.b16 %v175
  %v576 = vunpack.c.l.b16 %v176
  %v577 = vunpack.c.l.b16 %v177
  %v578 = vunpack.c.l.b16 %v178
  %v579 = vunpack.c.l.b16 %v179
  %v580 = vunpack.c.l.b16 %v180
  %v581 = vunpack.c.l.b16 %v181
  %v582 = vunpack.c.l.b16 %v182
  %v583 = vunpack.c.l.b16 %v183
  %v584 = vunpack.c.l.b16 %v184
  %v585 = vunpack.c.l.b16 %v185
  %v586 = vunpack.c.l.b16 %v186
  %v587 = vunpack.c.l.b16 %v187
  %v588 = vunpack.c.l.b16 %v188
  %v589 = vunpack.c.l.b16 %v189
  %v590 = vunpack.c.l.b16 %v190
  %v591 = vunpack.c.l.b16 %v191
  %v592 = vunpack.c.l.b16 %v192
  %v593 = vunpack.c.l.b16 %v193
  %v594 = vunpack.c.l.b16 %v194
  %v595 = vunpack.c.l.b16 %v195
  %v596 = vunpack.c.l.b16 %v196
  %v597 = vunpack.c.l.b16 %v197
  %v598 = vunpack.c.l.b16 %v198
  %v599 = vunpack.c.l.b16 %v199
  %v600 = vunpack.c.l.b16 %v200
  %v601 = vunpack.c.l.b16 %v201
  %v602 = vunpack.c.l.b16 %v202
  %v603 = vunpack.c.l.b16 %v203
  %v604 = vunpack.c.l.b16 %v204
  %v605 = vunpack.c.l.b16 %v205
  %v606 = vunpack.c.l.b16 %v206
  %v607 = vunpack.c.l.b16 %v207
  %v608 = vunpack.c.l.b16 %v208
  %v609 = vunpack.c.l.b16 %v209
  %v610 = vunpack.c.l.b16 %v210
  %v611 = vunpack.c.l.b16 %v211
  %v612 = vunpack.c.l.b16 %v212
  %v613 = vunpack.c.l.b16 %v213
  %v614 = vunpack.c.l.b16 %v214
  %v615 = vunpack.c.l.b16 %v215
  %v616 = vunpack.c.l.b16 %v216
  %v617 = vunpack.c.l.b16 %v217
  %v618 = vunpack.c.l.b16 %v218
  %v619 = vunpack.c.l.b16 %v219
  %v620 = vunpack.c.l.b16 %v220
  %v621 = vunpack.c.l.b16 %v221
  %v622 = vunpack.c.l.b16 %v222
  %v623 = vunpack.c.l.b16 %v223
  %v624 = vunpack.c.l.b16 %v224
  %v625 = vunpack.c.l.b16 %v225
  %v626 = vunpack.c.l.b16 %v226
  %v627 = vunpack.c.l.b16 %v227
  %v628 = vunpack.c.l.b16 %v228
  %v629 = vunpack.c.l.b16 %v229
  %v630 = vunpack.c.l.b16 %v230
  %v631 = vunpack.c.l.b16 %v231
  %v632 = vunpack.c.l.b16 %v232
  %v633 = vunpack.c.l.b16 %v233
  %v634 = vunpack.c.l.b16 %v234
  %v635 = vunpack.c.l.b16 %v235
  %v636 = vunpack.c.l.b16 %v236
  %v637 = vunpack.c.l.b16 %v237
  %v638 = vunpack.c.l.b16 %v238
  %v639 = vunpack.c.l.b16 %v239
  %v640 = vunpack.c.l.b16 %v240
  %v641 = vunpack.c.l.b16 %v241
  %v642 = vunpack.c.l.b16 %v242
  %v643 = vunpack.c.l.b16 %v243
  %v644 = vunpack.c.l.b16 %v244
  %v645 = vunpack.c.l.b16 %v245
  %v646 = vunpack.c.l.b16 %v246
  %v647 = vunpack.c.l.b16 %v247
  %v648 = vunpack.c.l.b16 %v248
  %v649 = vunpack.c.l.b16 %v249
  %v650 = vunpack.c.l.b16 %v250
  %v651 = vunpack.c.l.b16 %v251
  %v652 = vunpack.c.l.b16 %v252
  %v653 = vunpack.c.l.b16 %v253
  %v654 = vunpack.c.l.b16 %v254
  %v655 = vunpack.c.l.b16 %v255
  %v656 = vunpack.c.l.b16 %v256
  %v657 = vpack.c.b16 %v458, %v457
  %v658 = vpack.c.b16 %v460, %v459
  %v659 = vpack.c.b16 %v462, %v461
  %v660 = vpack.c.b16 %v464, %v463
  %v661 = vpack.c.b16 %v466, %v465
  %v662 = vpack.c.b16 %v468, %v467
  %v663 = vpack.c.b16 %v470, %v469
  %v664 = vpack.c.b16 %v472, %v471
  %v665 = vpack.c.b16 %v474, %v473
  %v666 = vpack.c.b16 %v476, %v475
  %v667 = vpack.c.b16 %v478, %v477
  %v668 = vpack.c.b16 %v480, %v479
  %v669 = vpack.c.b16 %v482, %v481
  %v670 = vpack.c.b16 %v484, %v483
  %v671 = vpack.c.b16 %v486, %v485
  %v672 = vpack.c.b16 %v488, %v487
  %v673 = vpack.c.b16 %v490, %v489
  %v674 = vpack.c.b16 %v492, %v491
  %v675 = vpack.c.b16 %v494, %v493
  %v676 = vpack.c.b16 %v496, %v495
  %v677 = vpack.c.b16 %v498, %v497
  %v678 = vpack.c.b16 %v500, %v499
  %v679 = vpack.c.b16 %v502, %v501
  %v680 = vpack.c.b16 %v504, %v503
  %v681 = vpack.c.b16 %v506, %v505
  %v682 = vpack.c.b16 %v508, %v507
  %v683 = vpack.c.b16 %v510, %v509
  %v684 = vpack.c.b16 %v512, %v511
  %v685 = vpack.c.b16 %v514, %v513
  %v686 = vpack.c.b16 %v516, %v515
  %v687 = vpack.c.b16 %v518, %v517
  %v688 = vpack.c.b16 %v520, %v519
  %v689 = vpack.c.b16 %v522, %v521
  %v690 = vpack.c.b16 %v524, %v523
  %v691 = vpack.c.b16 %v526, %v525
  %v692 = vpack.c.b16 %v528, %v527
  %v693 = vpack.c.b16 %v530, %v529
  %v694 = vpack.c.b16 %v532, %v531
  %v695 = vpack.c.b16 %v534, %v533
  %v696 = vpack.c.b16 %v536, %v535
  %v697 = vpack.c.b16 %v538, %v537
  %v698 = vpack.c.b16 %v540, %v539
  %v699 = vpack.c.b16 %v542, %v541
  %v700 = vpack.c.b16 %v544, %v543
  %v701 = vpack.c.b16 %v546, %v545
  %v702 = vpack.c.b16 %v548, %v547
  %v703 = vpack.c.b16 %v550, %v549
  %v704 = vpack.c.b16 %v552, %v551
  %v705 = vpack.c.b16 %v554, %v553
  %v706 = vpack.c.b16 %v556, %v555
  %v707 = vpack.c.b16 %v558, %v557
  %v708 = vpack.c.b16 %v560, %v559
  %v709 = vpack.c.b16 %v562, %v561
  %v710 = vpack.c.b16 %v564, %v563
  %v711 = vpack.c.b16 %v566, %v565
  %v712 = vpack.c.b16 %v568, %v567
  %v713 = vpack.c.b16 %v570, %v569
  %v714 = vpack.c.b16 %v572, %v571
  %v715 = vpack.c.b16 %v574, %v573
  %v716 = vpack.c.b16 %v576, %v575
  %v717 = vpack.c.b16 %v578, %v577
  %v718 = vpack.c.b16 %v580, %v579
  %v719 = vpack.c.b16 %v582, %v581
  %v720 = vpack.c.b16 %v584, %v583
  %v721 = vpack.c.b16 %v586, %v585
  %v722 = vpack.c.b16 %v588, %v587
  %v723 = vpack.c.b16 %v590, %v589
  %v724 = vpack.c.b16 %v592, %v591
  %v725 = vpack.c.b16 %v594, %v593
  %v726 = vpack.c.b16 %v596, %v595
  %v727 = vpack.c.b16 %v598, %v597
  %v728 = vpack.c.b16 %v600, %v599
  %v729 = vpack.c.b16 %v602, %v601
  %v730 = vpack.c.b16 %v604, %v603
  %v731 = vpack.c.b16 %v606, %v605
  %v732 = vpack.c.b16 %v608, %v607
  %v733 = vpack.c.b16 %v610, %v609
  %v734 = vpack.c.b16 %v612, %v611
  %v735 = vpack.c.b16 %v614, %v613
  %v736 = vpack.c.b16 %v616, %v615
  %v737 = vpack.c.b16 %v618, %v617
  %v738 = vpack.c.b16 %v620, %v619
  %v739 = vpack.c.b16 %v622, %v621
  %v740 = vpack.c.b16 %v624, %v623
  %v741 = vpack.c.b16 %v626, %v625
  %v742 = vpack.c.b16 %v628, %v627
  %v743 = vpack.c.b16 %v630, %v629
  %v744 = vpack.c.b16 %v632, %v631
  %v745 = vpack.c.b16 %v634, %v633
  %v746 = vpack.c.b16 %v636, %v635
  %v747 = vpack.c.b16 %v638, %v637
  %v748 = vpack.c.b16 %v640, %v639
  %v749 = vpack.c.b16 %v642, %v641
  %v750 = vpack.c.b16 %v644, %v643
  %v751 = vpack.c.b16 %v646, %v645
  %v752 = vpack.c.b16 %v648, %v647
  %v753 = vpack.c.b16 %v650, %v649
  %v754 = vpack.c.b16 %v652, %v651
  %v755 = vpack.c.b16 %v654, %v653
  %v756 = vpack.c.b16 %v656, %v655
  %vm857 = vcmask 523264
  %v859 = vsel %vm857, %v56, 0
  %861 = vmatprep.subr.bf16.mxu0 0
  %862 = vmatpush1.bf16.msra.mxu0 %v657
  %863 = vmatprep.subr.bf16.mxu0 0
  %864 = vmatpush1.bf16.msra.mxu0 %v658
  %865 = vmatprep.subr.bf16.mxu0 0
  %866 = vmatpush1.bf16.msra.mxu0 %v659
  %867 = vmatprep.subr.bf16.mxu0 0
  %868 = vmatpush1.bf16.msra.mxu0 %v660
  %869 = vmatprep.subr.bf16.mxu0 0
  %870 = vmatpush1.bf16.msra.mxu0 %v661
  %871 = vmatprep.subr.bf16.mxu0 0
  %872 = vmatpush1.bf16.msra.mxu0 %v662
  %873 = vmatprep.subr.bf16.mxu0 0
  %874 = vmatpush1.bf16.msra.mxu0 %v663
  %875 = vmatprep.subr.bf16.mxu0 0
  %876 = vmatpush1.bf16.msra.mxu0 %v664
  %877 = vmatprep.subr.bf16.mxu0 0
  %878 = vmatpush1.bf16.msra.mxu0 %v665
  %879 = vmatprep.subr.bf16.mxu0 0
  %880 = vmatpush1.bf16.msra.mxu0 %v666
  %881 = vmatprep.subr.bf16.mxu0 0
  %882 = vmatpush1.bf16.msra.mxu0 %v667
  %883 = vmatprep.subr.bf16.mxu0 0
  %884 = vmatpush1.bf16.msra.mxu0 %v668
  %885 = vmatprep.subr.bf16.mxu0 0
  %886 = vmatpush1.bf16.msra.mxu0 %v669
  %887 = vmatprep.subr.bf16.mxu0 0
  %888 = vmatpush1.bf16.msra.mxu0 %v670
  %889 = vmatprep.subr.bf16.mxu0 0
  %890 = vmatpush1.bf16.msra.mxu0 %v671
  %891 = vmatprep.subr.bf16.mxu0 0
  %892 = vmatpush1.bf16.msra.mxu0 %v672
  %893 = vmatprep.mubr.bf16.mxu0 %v45
  %894 = vmatmul.mubr.bf16.gmra.mrb[0].mxu0 %v44
  %v895 = vpop.f32.mrb[0].mxu0
  %v896 = vadd.f32 0.0, %v895
  %v897 = vpop.f32.mrb[0].mxu0
  %v898 = vpop.f32.mrb[0].mxu0
  %v899 = vadd.f32 0.0, %v898
  %v900 = vpop.f32.mrb[0].mxu0
  %901 = vdwg.mxu0
  %902 = vmatprep.subr.bf16.mxu0 0
  %903 = vmatpush1.bf16.msra.mxu0 %v673
  %904 = vmatprep.subr.bf16.mxu0 0
  %905 = vmatpush1.bf16.msra.mxu0 %v674
  %906 = vmatprep.subr.bf16.mxu0 0
  %907 = vmatpush1.bf16.msra.mxu0 %v675
  %908 = vmatprep.subr.bf16.mxu0 0
  %909 = vmatpush1.bf16.msra.mxu0 %v676
  %910 = vmatprep.subr.bf16.mxu0 0
  %911 = vmatpush1.bf16.msra.mxu0 %v677
  %912 = vmatprep.subr.bf16.mxu0 0
  %913 = vmatpush1.bf16.msra.mxu0 %v678
  %914 = vmatprep.subr.bf16.mxu0 0
  %915 = vmatpush1.bf16.msra.mxu0 %v679
  %916 = vmatprep.subr.bf16.mxu0 0
  %917 = vmatpush1.bf16.msra.mxu0 %v680
  %918 = vmatprep.subr.bf16.mxu0 0
  %919 = vmatpush1.bf16.msra.mxu0 %v681
  %920 = vmatprep.subr.bf16.mxu0 0
  %921 = vmatpush1.bf16.msra.mxu0 %v682
  %922 = vmatprep.subr.bf16.mxu0 0
  %923 = vmatpush1.bf16.msra.mxu0 %v683
  %924 = vmatprep.subr.bf16.mxu0 0
  %925 = vmatpush1.bf16.msra.mxu0 %v684
  %926 = vmatprep.subr.bf16.mxu0 0
  %927 = vmatpush1.bf16.msra.mxu0 %v685
  %928 = vmatprep.subr.bf16.mxu0 0
  %929 = vmatpush1.bf16.msra.mxu0 %v686
  %930 = vmatprep.subr.bf16.mxu0 0
  %931 = vmatpush1.bf16.msra.mxu0 %v687
  %932 = vmatprep.subr.bf16.mxu0 0
  %933 = vmatpush1.bf16.msra.mxu0 %v688
  %934 = vmatprep.mubr.bf16.mxu0 %v47
  %935 = vmatmul.mubr.bf16.gmra.mrb[0].mxu0 %v46
  %v936 = vpop.f32.mrb[0].mxu0
  %v937 = vadd.f32 %v896, %v936
  %v938 = vpop.f32.mrb[0].mxu0
  %v939 = vpop.f32.mrb[0].mxu0
  %v940 = vadd.f32 %v899, %v939
  %v941 = vpop.f32.mrb[0].mxu0
  %942 = vdwg.mxu0
  %943 = vmatprep.subr.bf16.mxu0 0
  %944 = vmatpush1.bf16.msra.mxu0 %v689
  %945 = vmatprep.subr.bf16.mxu0 0
  %946 = vmatpush1.bf16.msra.mxu0 %v690
  %947 = vmatprep.subr.bf16.mxu0 0
  %948 = vmatpush1.bf16.msra.mxu0 %v691
  %949 = vmatprep.subr.bf16.mxu0 0
  %950 = vmatpush1.bf16.msra.mxu0 %v692
  %951 = vmatprep.subr.bf16.mxu0 0
  %952 = vmatpush1.bf16.msra.mxu0 %v693
  %953 = vmatprep.subr.bf16.mxu0 0
  %954 = vmatpush1.bf16.msra.mxu0 %v694
  %955 = vmatprep.subr.bf16.mxu0 0
  %956 = vmatpush1.bf16.msra.mxu0 %v695
  %957 = vmatprep.subr.bf16.mxu0 0
  %958 = vmatpush1.bf16.msra.mxu0 %v696
  %959 = vmatprep.subr.bf16.mxu0 0
  %960 = vmatpush1.bf16.msra.mxu0 %v697
  %961 = vmatprep.subr.bf16.mxu0 0
  %962 = vmatpush1.bf16.msra.mxu0 %v698
  %963 = vmatprep.subr.bf16.mxu0 0
  %964 = vmatpush1.bf16.msra.mxu0 %v699
  %965 = vmatprep.subr.bf16.mxu0 0
  %966 = vmatpush1.bf16.msra.mxu0 %v700
  %967 = vmatprep.subr.bf16.mxu0 0
  %968 = vmatpush1.bf16.msra.mxu0 %v701
  %969 = vmatprep.subr.bf16.mxu0 0
  %970 = vmatpush1.bf16.msra.mxu0 %v702
  %971 = vmatprep.subr.bf16.mxu0 0
  %972 = vmatpush1.bf16.msra.mxu0 %v703
  %973 = vmatprep.subr.bf16.mxu0 0
  %974 = vmatpush1.bf16.msra.mxu0 %v704
  %975 = vmatprep.mubr.bf16.mxu0 %v49
  %976 = vmatmul.mubr.bf16.gmra.mrb[0].mxu0 %v48
  %v977 = vpop.f32.mrb[0].mxu0
  %v978 = vadd.f32 %v937, %v977
  %v979 = vpop.f32.mrb[0].mxu0
  %v980 = vpop.f32.mrb[0].mxu0
  %v981 = vadd.f32 %v940, %v980
  %v982 = vpop.f32.mrb[0].mxu0
  %983 = vdwg.mxu0
  %984 = vmatprep.subr.bf16.mxu0 0
  %985 = vmatpush1.bf16.msra.mxu0 %v705
  %986 = vmatprep.subr.bf16.mxu0 0
  %987 = vmatpush1.bf16.msra.mxu0 %v706
  %988 = vmatprep.subr.bf16.mxu0 0
  %989 = vmatpush1.bf16.msra.mxu0 %v707
  %990 = vmatprep.subr.bf16.mxu0 0
  %991 = vmatpush1.bf16.msra.mxu0 %v708
  %992 = vmatprep.subr.bf16.mxu0 0
  %993 = vmatpush1.bf16.msra.mxu0 %v709
  %994 = vmatprep.subr.bf16.mxu0 0
  %995 = vmatpush1.bf16.msra.mxu0 %v710
  %996 = vmatprep.subr.bf16.mxu0 0
  %997 = vmatpush1.bf16.msra.mxu0 %v711
  %998 = vmatprep.subr.bf16.mxu0 0
  %999 = vmatpush1.bf16.msra.mxu0 %v712
  %1000 = vmatprep.subr.bf16.mxu0 0
  %1001 = vmatpush1.bf16.msra.mxu0 %v713
  %1002 = vmatprep.subr.bf16.mxu0 0
  %1003 = vmatpush1.bf16.msra.mxu0 %v714
  %1004 = vmatprep.subr.bf16.mxu0 0
  %1005 = vmatpush1.bf16.msra.mxu0 %v715
  %1006 = vmatprep.subr.bf16.mxu0 0
  %1007 = vmatpush1.bf16.msra.mxu0 %v716
  %1008 = vmatprep.subr.bf16.mxu0 0
  %1009 = vmatpush1.bf16.msra.mxu0 %v717
  %1010 = vmatprep.subr.bf16.mxu0 0
  %1011 = vmatpush1.bf16.msra.mxu0 %v718
  %1012 = vmatprep.subr.bf16.mxu0 0
  %1013 = vmatpush1.bf16.msra.mxu0 %v719
  %1014 = vmatprep.subr.bf16.mxu0 0
  %1015 = vmatpush1.bf16.msra.mxu0 %v720
  %1016 = vmatprep.mubr.bf16.mxu0 %v51
  %1017 = vmatmul.mubr.bf16.gmra.mrb[0].mxu0 %v50
  %v1018 = vpop.f32.mrb[0].mxu0
  %v1019 = vadd.f32 %v978, %v1018
  %v1020 = vpop.f32.mrb[0].mxu0
  %v1021 = vpop.f32.mrb[0].mxu0
  %v1022 = vadd.f32 %v981, %v1021
  %v1023 = vpop.f32.mrb[0].mxu0
  %1024 = vdwg.mxu0
  %1025 = vmatprep.subr.bf16.mxu0 0
  %1026 = vmatpush1.bf16.msra.mxu0 %v721
  %1027 = vmatprep.subr.bf16.mxu0 0
  %1028 = vmatpush1.bf16.msra.mxu0 %v722
  %1029 = vmatprep.subr.bf16.mxu0 0
  %1030 = vmatpush1.bf16.msra.mxu0 %v723
  %1031 = vmatprep.subr.bf16.mxu0 0
  %1032 = vmatpush1.bf16.msra.mxu0 %v724
  %1033 = vmatprep.subr.bf16.mxu0 0
  %1034 = vmatpush1.bf16.msra.mxu0 %v725
  %1035 = vmatprep.subr.bf16.mxu0 0
  %1036 = vmatpush1.bf16.msra.mxu0 %v726
  %1037 = vmatprep.subr.bf16.mxu0 0
  %1038 = vmatpush1.bf16.msra.mxu0 %v727
  %1039 = vmatprep.subr.bf16.mxu0 0
  %1040 = vmatpush1.bf16.msra.mxu0 %v728
  %1041 = vmatprep.subr.bf16.mxu0 0
  %1042 = vmatpush1.bf16.msra.mxu0 %v729
  %1043 = vmatprep.subr.bf16.mxu0 0
  %1044 = vmatpush1.bf16.msra.mxu0 %v730
  %1045 = vmatprep.subr.bf16.mxu0 0
  %1046 = vmatpush1.bf16.msra.mxu0 %v731
  %1047 = vmatprep.subr.bf16.mxu0 0
  %1048 = vmatpush1.bf16.msra.mxu0 %v732
  %1049 = vmatprep.subr.bf16.mxu0 0
  %1050 = vmatpush1.bf16.msra.mxu0 %v733
  %1051 = vmatprep.subr.bf16.mxu0 0
  %1052 = vmatpush1.bf16.msra.mxu0 %v734
  %1053 = vmatprep.subr.bf16.mxu0 0
  %1054 = vmatpush1.bf16.msra.mxu0 %v735
  %1055 = vmatprep.subr.bf16.mxu0 0
  %1056 = vmatpush1.bf16.msra.mxu0 %v736
  %1057 = vmatprep.mubr.bf16.mxu0 %v53
  %1058 = vmatmul.mubr.bf16.gmra.mrb[0].mxu0 %v52
  %v1059 = vpop.f32.mrb[0].mxu0
  %v1060 = vadd.f32 %v1019, %v1059
  %v1061 = vpop.f32.mrb[0].mxu0
  %v1062 = vpop.f32.mrb[0].mxu0
  %v1063 = vadd.f32 %v1022, %v1062
  %v1064 = vpop.f32.mrb[0].mxu0
  %1065 = vdwg.mxu0
  %1066 = vmatprep.subr.bf16.mxu0 0
  %1067 = vmatpush1.bf16.msra.mxu0 %v737
  %1068 = vmatprep.subr.bf16.mxu0 0
  %1069 = vmatpush1.bf16.msra.mxu0 %v738
  %1070 = vmatprep.subr.bf16.mxu0 0
  %1071 = vmatpush1.bf16.msra.mxu0 %v739
  %1072 = vmatprep.subr.bf16.mxu0 0
  %1073 = vmatpush1.bf16.msra.mxu0 %v740
  %1074 = vmatprep.subr.bf16.mxu0 0
  %1075 = vmatpush1.bf16.msra.mxu0 %v741
  %1076 = vmatprep.subr.bf16.mxu0 0
  %1077 = vmatpush1.bf16.msra.mxu0 %v742
  %1078 = vmatprep.subr.bf16.mxu0 0
  %1079 = vmatpush1.bf16.msra.mxu0 %v743
  %1080 = vmatprep.subr.bf16.mxu0 0
  %1081 = vmatpush1.bf16.msra.mxu0 %v744
  %1082 = vmatprep.subr.bf16.mxu0 0
  %1083 = vmatpush1.bf16.msra.mxu0 %v745
  %1084 = vmatprep.subr.bf16.mxu0 0
  %1085 = vmatpush1.bf16.msra.mxu0 %v746
  %1086 = vmatprep.subr.bf16.mxu0 0
  %1087 = vmatpush1.bf16.msra.mxu0 %v747
  %1088 = vmatprep.subr.bf16.mxu0 0
  %1089 = vmatpush1.bf16.msra.mxu0 %v748
  %1090 = vmatprep.subr.bf16.mxu0 0
  %1091 = vmatpush1.bf16.msra.mxu0 %v749
  %1092 = vmatprep.subr.bf16.mxu0 0
  %1093 = vmatpush1.bf16.msra.mxu0 %v750
  %1094 = vmatprep.subr.bf16.mxu0 0
  %1095 = vmatpush1.bf16.msra.mxu0 %v751
  %1096 = vmatprep.subr.bf16.mxu0 0
  %1097 = vmatpush1.bf16.msra.mxu0 %v752
  %1098 = vmatprep.mubr.bf16.mxu0 %v55
  %1099 = vmatmul.mubr.bf16.gmra.mrb[0].mxu0 %v54
  %v1100 = vpop.f32.mrb[0].mxu0
  %v1101 = vadd.f32 %v1060, %v1100
  %v1102 = vpop.f32.mrb[0].mxu0
  %v1103 = vpop.f32.mrb[0].mxu0
  %v1104 = vadd.f32 %v1063, %v1103
  %v1105 = vpop.f32.mrb[0].mxu0
  %1106 = vdwg.mxu0
  %1107 = vmatprep.subr.bf16.mxu0 0
  %1108 = vmatpush1.bf16.msra.mxu0 %v753
  %1109 = vmatprep.subr.bf16.mxu0 0
  %1110 = vmatpush1.bf16.msra.mxu0 %v754
  %1111 = vmatprep.subr.bf16.mxu0 0
  %1112 = vmatpush1.bf16.msra.mxu0 %v755
  %1113 = vmatprep.subr.bf16.mxu0 0
  %1114 = vmatpush1.bf16.msra.mxu0 %v756
  %1115 = vmatprep.subr.bf16.mxu0 0
  %1116 = vmatpush1.bf16.msra.mxu0 0
  %1117 = vmatprep.subr.bf16.mxu0 0
  %1118 = vmatpush1.bf16.msra.mxu0 0
  %1119 = vmatprep.subr.bf16.mxu0 0
  %1120 = vmatpush1.bf16.msra.mxu0 0
  %1121 = vmatprep.subr.bf16.mxu0 0
  %1122 = vmatpush1.bf16.msra.mxu0 0
  %1123 = vmatprep.subr.bf16.mxu0 0
  %1124 = vmatpush1.bf16.msra.mxu0 0
  %1125 = vmatprep.subr.bf16.mxu0 0
  %1126 = vmatpush1.bf16.msra.mxu0 0
  %1127 = vmatprep.subr.bf16.mxu0 0
  %1128 = vmatpush1.bf16.msra.mxu0 0
  %1129 = vmatprep.subr.bf16.mxu0 0
  %1130 = vmatpush1.bf16.msra.mxu0 0
  %1131 = vmatprep.subr.bf16.mxu0 0
  %1132 = vmatpush1.bf16.msra.mxu0 0
  %1133 = vmatprep.subr.bf16.mxu0 0
  %1134 = vmatpush1.bf16.msra.mxu0 0
  %1135 = vmatprep.subr.bf16.mxu0 0
  %1136 = vmatpush1.bf16.msra.mxu0 0
  %1137 = vmatprep.subr.bf16.mxu0 0
  %1138 = vmatpush1.bf16.msra.mxu0 0
  %1139 = vmatprep.mubr.bf16.mxu0 0
  %1140 = vmatmul.mubr.bf16.gmra.mrb[0].mxu0 %v859
  %v1141 = vpop.f32.mrb[0].mxu0
  %v1142 = vadd.f32 %v1101, %v1141
  %v1143 = vpop.f32.mrb[0].mxu0
  %v1144 = vpop.f32.mrb[0].mxu0
  %v1145 = vadd.f32 %v1104, %v1144
  %v1146 = vpop.f32.mrb[0].mxu0
  %1147 = vdwg.mxu0
  %v1148 = vmax.f32 %v1142, 0.0
  %v1149 = vmax.f32 %v1145, 0.0
  %v1150 = vld [vmem:[%s2] sm:$0xff]
  %v1151 = vld [vmem:[%s2 + $0x8] sm:$0xff]
  %v1152 = vld [vmem:[%s2 + $0x10] sm:$0xff]
  %v1153 = vld [vmem:[%s2 + $0x18] sm:$0xff]
  %vm1154 = vcmask 261120
  %v1156 = vsel %vm1154, %v1148, 0
  %v1159 = vsel %vm1154, %v1149, 0
  %1161 = vmatprep.subr.mxu0 0.0
  %1162 = vmatpush1.msra.mxu0 %v1150
  %1163 = vmatprep.subr.mxu0 0.0
  %1164 = vmatpush1.msra.mxu0 %v1151
  %1165 = vmatprep.subr.mxu0 0.0
  %1166 = vmatpush1.msra.mxu0 %v1152
  %1167 = vmatprep.subr.mxu0 0.0
  %1168 = vmatpush1.msra.mxu0 %v1153
  %1169 = vmatprep.subr.mxu0 0.0
  %1170 = vmatpush1.msra.mxu0 0.0
  %1171 = vmatprep.subr.mxu0 0.0
  %1172 = vmatpush1.msra.mxu0 0.0
  %1173 = vmatprep.subr.mxu0 0.0
  %1174 = vmatpush1.msra.mxu0 0.0
  %1175 = vmatprep.subr.mxu0 0.0
  %1176 = vmatpush1.msra.mxu0 0.0
  %1177 = vmatprep.subr.mxu0 0.0
  %1178 = vmatpush1.msra.mxu0 0.0
  %1179 = vmatprep.subr.mxu0 0.0
  %1180 = vmatpush1.msra.mxu0 0.0
  %1181 = vmatprep.subr.mxu0 0.0
  %1182 = vmatpush1.msra.mxu0 0.0
  %1183 = vmatprep.subr.mxu0 0.0
  %1184 = vmatpush1.msra.mxu0 0.0
  %1185 = vmatprep.subr.mxu0 0.0
  %1186 = vmatpush1.msra.mxu0 0.0
  %1187 = vmatprep.subr.mxu0 0.0
  %1188 = vmatpush1.msra.mxu0 0.0
  %1189 = vmatprep.subr.mxu0 0.0
  %1190 = vmatpush1.msra.mxu0 0.0
  %1191 = vmatprep.subr.mxu0 0.0
  %1192 = vmatpush1.msra.mxu0 0.0
  %1193 = vmatprep.subr.mxu0 0.0
  %1194 = vmatpush1.msra.mxu0 0.0
  %1195 = vmatprep.subr.mxu0 0.0
  %1196 = vmatpush1.msra.mxu0 0.0
  %1197 = vmatprep.subr.mxu0 0.0
  %1198 = vmatpush1.msra.mxu0 0.0
  %1199 = vmatprep.subr.mxu0 0.0
  %1200 = vmatpush1.msra.mxu0 0.0
  %1201 = vmatprep.subr.mxu0 0.0
  %1202 = vmatpush1.msra.mxu0 0.0
  %1203 = vmatprep.subr.mxu0 0.0
  %1204 = vmatpush1.msra.mxu0 0.0
  %1205 = vmatprep.subr.mxu0 0.0
  %1206 = vmatpush1.msra.mxu0 0.0
  %1207 = vmatprep.subr.mxu0 0.0
  %1208 = vmatpush1.msra.mxu0 0.0
  %1209 = vmatprep.subr.mxu0 0.0
  %1210 = vmatpush1.msra.mxu0 0.0
  %1211 = vmatprep.subr.mxu0 0.0
  %1212 = vmatpush1.msra.mxu0 0.0
  %1213 = vmatprep.subr.mxu0 0.0
  %1214 = vmatpush1.msra.mxu0 0.0
  %1215 = vmatprep.subr.mxu0 0.0
  %1216 = vmatpush1.msra.mxu0 0.0
  %1217 = vmatprep.subr.mxu0 0.0
  %1218 = vmatpush1.msra.mxu0 0.0
  %1219 = vmatprep.subr.mxu0 0.0
  %1220 = vmatpush1.msra.mxu0 0.0
  %1221 = vmatprep.subr.mxu0 0.0
  %1222 = vmatpush1.msra.mxu0 0.0
  %1223 = vmatprep.subr.mxu0 0.0
  %1224 = vmatpush1.msra.mxu0 0.0
  %1225 = vmatprep.mubr.f32.mxu0 0.0
  %1226 = vmatmul.mubr.f32.gmra.mrb[0].mxu0 %v1156
  %v1227 = vpop.f32.mrb[0].mxu0
  %v1228 = vadd.f32 0.0, %v1227
  %v1229 = vpop.f32.mrb[0].mxu0
  %1230 = vmatprep.mubr.f32.mxu0 0.0
  %1231 = vmatmul.mubr.f32.gmra.mrb[0].mxu0 %v1159
  %v1232 = vpop.f32.mrb[0].mxu0
  %v1233 = vadd.f32 0.0, %v1232
  %v1234 = vpop.f32.mrb[0].mxu0
  %1235 = vdwg.mxu0
  %v1236 = vmax.f32 %v1228, 0.0
  %v1237 = vmax.f32 %v1233, 0.0
  %s1238 = scalar_lea.vmem %s2, 32
  %v1239 = vld [vmem:[%s1238] sm:$0xff]
  %v1240 = vld [vmem:[%s1238 + $0x8] sm:$0xff]
  %v1241 = vld [vmem:[%s1238 + $0x10] sm:$0xff]
  %v1242 = vld [vmem:[%s1238 + $0x18] sm:$0xff]
  %v1244 = vsel %vm1154, %v1236, 0
  %v1247 = vsel %vm1154, %v1237, 0
  %1249 = vmatprep.subr.mxu0 0.0
  %1250 = vmatpush1.msra.mxu0 %v1239
  %1251 = vmatprep.subr.mxu0 0.0
  %1252 = vmatpush1.msra.mxu0 %v1240
  %1253 = vmatprep.subr.mxu0 0.0
  %1254 = vmatpush1.msra.mxu0 %v1241
  %1255 = vmatprep.subr.mxu0 0.0
  %1256 = vmatpush1.msra.mxu0 %v1242
  %1257 = vmatprep.subr.mxu0 0.0
  %1258 = vmatpush1.msra.mxu0 0.0
  %1259 = vmatprep.subr.mxu0 0.0
  %1260 = vmatpush1.msra.mxu0 0.0
  %1261 = vmatprep.subr.mxu0 0.0
  %1262 = vmatpush1.msra.mxu0 0.0
  %1263 = vmatprep.subr.mxu0 0.0
  %1264 = vmatpush1.msra.mxu0 0.0
  %1265 = vmatprep.subr.mxu0 0.0
  %1266 = vmatpush1.msra.mxu0 0.0
  %1267 = vmatprep.subr.mxu0 0.0
  %1268 = vmatpush1.msra.mxu0 0.0
  %1269 = vmatprep.subr.mxu0 0.0
  %1270 = vmatpush1.msra.mxu0 0.0
  %1271 = vmatprep.subr.mxu0 0.0
  %1272 = vmatpush1.msra.mxu0 0.0
  %1273 = vmatprep.subr.mxu0 0.0
  %1274 = vmatpush1.msra.mxu0 0.0
  %1275 = vmatprep.subr.mxu0 0.0
  %1276 = vmatpush1.msra.mxu0 0.0
  %1277 = vmatprep.subr.mxu0 0.0
  %1278 = vmatpush1.msra.mxu0 0.0
  %1279 = vmatprep.subr.mxu0 0.0
  %1280 = vmatpush1.msra.mxu0 0.0
  %1281 = vmatprep.subr.mxu0 0.0
  %1282 = vmatpush1.msra.mxu0 0.0
  %1283 = vmatprep.subr.mxu0 0.0
  %1284 = vmatpush1.msra.mxu0 0.0
  %1285 = vmatprep.subr.mxu0 0.0
  %1286 = vmatpush1.msra.mxu0 0.0
  %1287 = vmatprep.subr.mxu0 0.0
  %1288 = vmatpush1.msra.mxu0 0.0
  %1289 = vmatprep.subr.mxu0 0.0
  %1290 = vmatpush1.msra.mxu0 0.0
  %1291 = vmatprep.subr.mxu0 0.0
  %1292 = vmatpush1.msra.mxu0 0.0
  %1293 = vmatprep.subr.mxu0 0.0
  %1294 = vmatpush1.msra.mxu0 0.0
  %1295 = vmatprep.subr.mxu0 0.0
  %1296 = vmatpush1.msra.mxu0 0.0
  %1297 = vmatprep.subr.mxu0 0.0
  %1298 = vmatpush1.msra.mxu0 0.0
  %1299 = vmatprep.subr.mxu0 0.0
  %1300 = vmatpush1.msra.mxu0 0.0
  %1301 = vmatprep.subr.mxu0 0.0
  %1302 = vmatpush1.msra.mxu0 0.0
  %1303 = vmatprep.subr.mxu0 0.0
  %1304 = vmatpush1.msra.mxu0 0.0
  %1305 = vmatprep.subr.mxu0 0.0
  %1306 = vmatpush1.msra.mxu0 0.0
  %1307 = vmatprep.subr.mxu0 0.0
  %1308 = vmatpush1.msra.mxu0 0.0
  %1309 = vmatprep.subr.mxu0 0.0
  %1310 = vmatpush1.msra.mxu0 0.0
  %1311 = vmatprep.subr.mxu0 0.0
  %1312 = vmatpush1.msra.mxu0 0.0
  %1313 = vmatprep.mubr.f32.mxu0 0.0
  %1314 = vmatmul.mubr.f32.gmra.mrb[0].mxu0 %v1244
  %v1315 = vpop.f32.mrb[0].mxu0
  %v1316 = vadd.f32 0.0, %v1315
  %v1317 = vpop.f32.mrb[0].mxu0
  %1318 = vmatprep.mubr.f32.mxu0 0.0
  %1319 = vmatmul.mubr.f32.gmra.mrb[0].mxu0 %v1247
  %v1320 = vpop.f32.mrb[0].mxu0
  %v1321 = vadd.f32 0.0, %v1320
  %v1322 = vpop.f32.mrb[0].mxu0
  %1323 = vdwg.mxu0
  %v1324 = vmax.f32 %v1316, 0.0
  %v1325 = vmax.f32 %v1321, 0.0
  %v1326 = vld [vmem:[%s3] sm:$0xff]
  %v1327 = vld [vmem:[%s3 + $0x8] sm:$0xff]
  %v1328 = vld [vmem:[%s3 + $0x10] sm:$0xff]
  %v1329 = vld [vmem:[%s3 + $0x18] sm:$0xff]
  %v1331 = vsel %vm1154, %v1324, 0
  %v1334 = vsel %vm1154, %v1325, 0
  %1336 = vmatprep.subr.mxu0 0.0
  %1337 = vmatpush1.msra.mxu0 %v1326
  %1338 = vmatprep.subr.mxu0 0.0
  %1339 = vmatpush1.msra.mxu0 %v1327
  %1340 = vmatprep.subr.mxu0 0.0
  %1341 = vmatpush1.msra.mxu0 %v1328
  %1342 = vmatprep.subr.mxu0 0.0
  %1343 = vmatpush1.msra.mxu0 %v1329
  %1344 = vmatprep.subr.mxu0 0.0
  %1345 = vmatpush1.msra.mxu0 0.0
  %1346 = vmatprep.subr.mxu0 0.0
  %1347 = vmatpush1.msra.mxu0 0.0
  %1348 = vmatprep.subr.mxu0 0.0
  %1349 = vmatpush1.msra.mxu0 0.0
  %1350 = vmatprep.subr.mxu0 0.0
  %1351 = vmatpush1.msra.mxu0 0.0
  %1352 = vmatprep.subr.mxu0 0.0
  %1353 = vmatpush1.msra.mxu0 0.0
  %1354 = vmatprep.subr.mxu0 0.0
  %1355 = vmatpush1.msra.mxu0 0.0
  %1356 = vmatprep.subr.mxu0 0.0
  %1357 = vmatpush1.msra.mxu0 0.0
  %1358 = vmatprep.subr.mxu0 0.0
  %1359 = vmatpush1.msra.mxu0 0.0
  %1360 = vmatprep.subr.mxu0 0.0
  %1361 = vmatpush1.msra.mxu0 0.0
  %1362 = vmatprep.subr.mxu0 0.0
  %1363 = vmatpush1.msra.mxu0 0.0
  %1364 = vmatprep.subr.mxu0 0.0
  %1365 = vmatpush1.msra.mxu0 0.0
  %1366 = vmatprep.subr.mxu0 0.0
  %1367 = vmatpush1.msra.mxu0 0.0
  %1368 = vmatprep.subr.mxu0 0.0
  %1369 = vmatpush1.msra.mxu0 0.0
  %1370 = vmatprep.subr.mxu0 0.0
  %1371 = vmatpush1.msra.mxu0 0.0
  %1372 = vmatprep.subr.mxu0 0.0
  %1373 = vmatpush1.msra.mxu0 0.0
  %1374 = vmatprep.subr.mxu0 0.0
  %1375 = vmatpush1.msra.mxu0 0.0
  %1376 = vmatprep.subr.mxu0 0.0
  %1377 = vmatpush1.msra.mxu0 0.0
  %1378 = vmatprep.subr.mxu0 0.0
  %1379 = vmatpush1.msra.mxu0 0.0
  %1380 = vmatprep.subr.mxu0 0.0
  %1381 = vmatpush1.msra.mxu0 0.0
  %1382 = vmatprep.subr.mxu0 0.0
  %1383 = vmatpush1.msra.mxu0 0.0
  %1384 = vmatprep.subr.mxu0 0.0
  %1385 = vmatpush1.msra.mxu0 0.0
  %1386 = vmatprep.subr.mxu0 0.0
  %1387 = vmatpush1.msra.mxu0 0.0
  %1388 = vmatprep.subr.mxu0 0.0
  %1389 = vmatpush1.msra.mxu0 0.0
  %1390 = vmatprep.subr.mxu0 0.0
  %1391 = vmatpush1.msra.mxu0 0.0
  %1392 = vmatprep.subr.mxu0 0.0
  %1393 = vmatpush1.msra.mxu0 0.0
  %1394 = vmatprep.subr.mxu0 0.0
  %1395 = vmatpush1.msra.mxu0 0.0
  %1396 = vmatprep.subr.mxu0 0.0
  %1397 = vmatpush1.msra.mxu0 0.0
  %1398 = vmatprep.subr.mxu0 0.0
  %1399 = vmatpush1.msra.mxu0 0.0
  %1400 = vmatprep.mubr.f32.mxu0 0.0
  %1401 = vmatmul.mubr.f32.gmra.mrb[0].mxu0 %v1331
  %v1402 = vpop.f32.mrb[0].mxu0
  %v1403 = vadd.f32 0.0, %v1402
  %v1404 = vpop.f32.mrb[0].mxu0
  %1405 = vmatprep.mubr.f32.mxu0 0.0
  %1406 = vmatmul.mubr.f32.gmra.mrb[0].mxu0 %v1334
  %v1407 = vpop.f32.mrb[0].mxu0
  %v1408 = vadd.f32 0.0, %v1407
  %v1409 = vpop.f32.mrb[0].mxu0
  %1410 = vdwg.mxu0
  %vm1411 = vcmask 80896
  %v1412 = vsel %vm1411, %v1403, -inf
  %1413 = vmax.xlane.f32.xlu0 %v1412
  %v1414 = vpop.xlane.xlu0 %1413
  %v1415 = vsel %vm1411, %v1408, -inf
  %1416 = vmax.xlane.f32.xlu0 %v1415
  %v1417 = vpop.xlane.xlu0 %1416
  %v1418 = vsub.f32 %v1403, %v1414
  %v1419 = vsub.f32 %v1408, %v1417
  %v1420 = vmul.f32 %v1418, 1.442695
  %v1421 = vpow.pop %v1420
  %v1422 = vmul.f32 %v1419, 1.442695
  %v1423 = vpow.pop %v1422
  %v1424 = vsel %vm1411, %v1421, 0.0
  %1425 = vadd.xlane.f32.xlu0 %v1424
  %v1426 = vpop.xlane.xlu0 %1425
  %v1427 = vsel %vm1411, %v1423, 0.0
  %1428 = vadd.xlane.f32.xlu0 %v1427
  %v1429 = vpop.xlane.xlu0 %1428
  %v1430 = vlog2.pop %v1426
  %v1431 = vmul.f32 %v1430, 0.6931472
  %v1432 = vlog2.pop %v1429
  %v1433 = vmul.f32 %v1432, 0.6931472
  %v1434 = vsub.f32 %v1418, %v1431
  %v1435 = vsub.f32 %v1419, %v1433
  %1436 = vst.msk [vmem:[%s4] sm:$0xff] %vm1411, %v1434
  %1437 = vst.msk [vmem:[%s4 + $0x8] sm:$0xff] %vm1411, %v1435
  // Predicated region
  $region18: #{fcnet_forward.1} parent=0 // pred_check
    _
  $region19: #{fcnet_forward.1} parent=0 // pred_check_branch
    %1439 = sbr.rel (0) target = $region21
  $region20: #{fcnet_forward.1} parent=0 // pred_region
    _
  $region21: #{fcnet_forward.1} parent=0 // pred_fallthru
    _
  // Predicated region
  $region22: #{fcnet_forward.1} parent=0 // pred_check
    _
  $region23: #{fcnet_forward.1} parent=0 // pred_check_branch
    %1441 = sbr.rel (0) target = $region25
  $region24: #{fcnet_forward.1} parent=0 // pred_region
    _
  $region25: #{fcnet_forward.1} parent=0 // pred_fallthru
    _

</llo_original>
